<compile_context>
chip_gen: v5e
topology: v5e:2x2
jax: 0.10.0
libtpu: 0.0.40
codegen_flags: <defaults>
</compile_context>

<pallas_src>
import jax
import jax.numpy as jnp
from jax import lax
from jax.experimental import pallas as pl
from jax.experimental.pallas import tpu as pltpu


def qcritic_kernel(s_ref, a_ref, w1s_ref, w1a_ref, b1_ref, w2_ref, b2_ref,
                   w3t_ref, b3_ref, o_ref):
    cd = s_ref.dtype  # matmul-operand (compute) dtype; accumulation is f32

    # Layer 1 — concat-free: split-K over the (states | actions) halves of W1.
    h1 = jnp.dot(s_ref[...], w1s_ref[...], preferred_element_type=jnp.float32)
    h1 = h1 + jnp.dot(a_ref[...], w1a_ref[...],
                      preferred_element_type=jnp.float32)
    h1 = jnp.maximum(h1 + b1_ref[...], 0.0)                    # ReLU (f32)

    # Layer 2.
    h2 = jnp.dot(h1.astype(cd), w2_ref[...],
                 preferred_element_type=jnp.float32)
    h2 = jnp.maximum(h2 + b2_ref[...], 0.0)                    # ReLU (f32)

    # Layer 3 (out_features == 1) — transposed form (1, h2)·(tile_b, h2)^T so the
    # store is a lane-dense (1, tile_b) block rather than masked 1-wide columns.
    q = lax.dot_general(
        w3t_ref[...], h2.astype(cd),
        dimension_numbers=(((1,), (1,)), ((), ())),
        preferred_element_type=jnp.float32)
    o_ref[...] = (q + b3_ref[...]).astype(o_ref.dtype)          # Identity


def _default_tile_b(B):
    # 512–2048-row tiles: >= 2 grid steps (pipelining + v7x megacore sharding)
    # while staying far below the scoped-VMEM defaults on v5e/v6e/v7x.
    for t in (2048, 1024, 512, 256, 128):
        if B % t == 0 and B // t >= 2:
            return t
    return B


def qcritic_forward(states, actions, params, *, tile_b=None,
                    compute_dtype=jnp.bfloat16):
    """QCritic forward. Returns q of shape (B, 1), float32."""
    B, state_dim = states.shape
    Ba, action_dim = actions.shape
    assert Ba == B
    w1, b1, w2, b2, w3, b3 = params
    h1d = w1.shape[1]
    h2d = w2.shape[1]
    assert w1.shape[0] == state_dim + action_dim
    assert w3.shape == (h2d, 1)

    if tile_b is None:
        tile_b = _default_tile_b(B)
    assert B % tile_b == 0, "tile_b must divide the batch"
    assert tile_b == B or tile_b % 128 == 0, (
        "tile_b must be a multiple of 128 (lane-dense (1, tile_b) output block, "
        "8-sublane input blocks) unless it equals the full batch")
    grid = (B // tile_b,)

    # Matmul operands in compute_dtype (bf16 by default: native MXU path; for
    # the full HBM-bandwidth win callers should already hold bf16 states /
    # actions). Biases and accumulation stay f32.
    s = states.astype(compute_dtype)
    a = actions.astype(compute_dtype)
    w1s = w1[:state_dim].astype(compute_dtype)       # kills the in-kernel concat
    w1a = w1[state_dim:].astype(compute_dtype)
    w2c = w2.astype(compute_dtype)
    w3t = w3.reshape(1, h2d).astype(compute_dtype)   # last layer, transposed
    b1c = b1.reshape(1, h1d).astype(jnp.float32)
    b2c = b2.reshape(1, h2d).astype(jnp.float32)
    b3c = b3.reshape(1, 1).astype(jnp.float32)

    full = lambda shape: pl.BlockSpec(shape, lambda i: (0, 0))

    q_row = pl.pallas_call(
        qcritic_kernel,
        out_shape=jax.ShapeDtypeStruct((1, B), jnp.float32),
        grid_spec=pltpu.PrefetchScalarGridSpec(
            num_scalar_prefetch=0,
            grid=grid,
            in_specs=[
                pl.BlockSpec((tile_b, state_dim), lambda i: (i, 0)),   # states
                pl.BlockSpec((tile_b, action_dim), lambda i: (i, 0)),  # actions
                full((state_dim, h1d)),    # W1[:state_dim]
                full((action_dim, h1d)),   # W1[state_dim:]
                full((1, h1d)),            # b1
                full((h1d, h2d)),          # W2
                full((1, h2d)),            # b2
                full((1, h2d)),            # W3^T
                full((1, 1)),              # b3
            ],
            out_specs=pl.BlockSpec((1, tile_b), lambda i: (0, i)),
        ),
        compiler_params=pltpu.CompilerParams(
            dimension_semantics=("parallel",)),
    )(s, a, w1s, w1a, b1c, w2c, b2c, w3t, b3c)

    # Layout plumbing only: lane-dense (1, B) slab -> (B, 1) column.
    return q_row.reshape(B, 1)


def init_qcritic_params(key, state_dim, action_dim, hidden_dims,
                        init_w=0.003, init_b=0.1):
    """Deterministic parameter init mirroring the PyTorch module."""
    in_dim = state_dim + action_dim
    dims = [in_dim] + list(hidden_dims) + [1]
    params = []
    keys = jax.random.split(key, len(dims) - 1)
    for li, (d_in, d_out) in enumerate(zip(dims[:-1], dims[1:])):
        is_last = li == len(dims) - 2
        if is_last:
            # init_last_: uniform(-init_w, init_w) for weight and bias
            w = jax.random.uniform(keys[li], (d_in, d_out), jnp.float32,
                                   minval=-init_w, maxval=init_w)
            b = jax.random.uniform(jax.random.fold_in(keys[li], 1),
                                   (1, d_out), jnp.float32,
                                   minval=-init_w, maxval=init_w)
        else:
            # init_: fanin_init weight, constant(init_b) bias
            bound = 1.0 / jnp.sqrt(jnp.float32(d_in))
            w = jax.random.uniform(keys[li], (d_in, d_out), jnp.float32,
                                   minval=-bound, maxval=bound)
            b = jnp.full((1, d_out), init_b, dtype=jnp.float32)
        params.extend([w, b])
    return tuple(params)


def qcritic_reference(states, actions, params, compute_dtype=jnp.float32):
    """Plain-JAX reference; compute_dtype mirrors the kernel's operand casts."""
    w1, b1, w2, b2, w3, b3 = params
    cd = compute_dtype
    x = jnp.concatenate([states, actions], axis=-1)
    h = jnp.dot(x.astype(cd), w1.astype(cd),
                preferred_element_type=jnp.float32) + b1
    h = jnp.maximum(h, 0.0)
    h = jnp.dot(h.astype(cd), w2.astype(cd),
                preferred_element_type=jnp.float32) + b2
    h = jnp.maximum(h, 0.0)
    return jnp.dot(h.astype(cd), w3.astype(cd),
                   preferred_element_type=jnp.float32) + b3


if __name__ == "__main__":
    # Small shapes: batch=8, state_dim=16, Box action space with shape (8,),
    # hidden_dims=[32, 32].
    B, STATE_DIM, ACTION_DIM = 8, 16, 8
    HIDDEN_DIMS = [32, 32]

    key = jax.random.PRNGKey(0)
    k_s, k_a, k_p = jax.random.split(key, 3)

    states = jax.random.normal(k_s, (B, STATE_DIM), jnp.float32)
    actions = jax.random.normal(k_a, (B, ACTION_DIM), jnp.float32)
    params = init_qcritic_params(k_p, STATE_DIM, ACTION_DIM, HIDDEN_DIMS)

    q = qcritic_forward(states, actions, params)  # bf16 operands, f32 accum
    q = jax.block_until_ready(q)
    assert q.shape == (B, 1)

    # Matched-precision check (same bf16 operand rounding as the kernel).
    q_ref_bf16 = qcritic_reference(states, actions, params,
                                   compute_dtype=jnp.bfloat16)
    assert jnp.allclose(q, q_ref_bf16, atol=2e-3, rtol=2e-3), \
        "mismatch vs matched-precision reference"

    # Sanity check against the pure-f32 reference (looser: bf16 rounding).
    q_ref_f32 = qcritic_reference(states, actions, params,
                                  compute_dtype=jnp.float32)
    assert jnp.allclose(q, q_ref_f32, atol=2e-2, rtol=2e-2), \
        "mismatch vs f32 reference"

    print("KERNEL_OK")
</pallas_src>

<mosaic_0001>
module attributes {stable_mosaic.version = 11 : i64} {
  func.func @qcritic_kernel(%arg0: i32, %arg1: memref<8x16xbf16, #tpu.memory_space<vmem>>, %arg2: memref<8x8xbf16, #tpu.memory_space<vmem>>, %arg3: memref<16x32xbf16, #tpu.memory_space<vmem>>, %arg4: memref<8x32xbf16, #tpu.memory_space<vmem>>, %arg5: memref<1x32xf32, #tpu.memory_space<vmem>>, %arg6: memref<32x32xbf16, #tpu.memory_space<vmem>>, %arg7: memref<1x32xf32, #tpu.memory_space<vmem>>, %arg8: memref<1x32xbf16, #tpu.memory_space<vmem>>, %arg9: memref<1x1xf32, #tpu.memory_space<vmem>>, %arg10: memref<1x8xf32, #tpu.memory_space<vmem>>) attributes {dimension_semantics = [#tpu.dimension_semantics<parallel>], iteration_bounds = array<i64: 1>, scalar_prefetch = 0 : i64, scratch_operands = 0 : i64, tpu.core_type = #tpu.core_type<tc>, window_params = [{transform_indices = @transform_0, window_bounds = array<i64: 8, 16>}, {transform_indices = @transform_1, window_bounds = array<i64: 8, 8>}, {pipeline_mode = #tpu.pipeline_mode<synchronous>, transform_indices = @transform_2, window_bounds = array<i64: 16, 32>}, {pipeline_mode = #tpu.pipeline_mode<synchronous>, transform_indices = @transform_3, window_bounds = array<i64: 8, 32>}, {pipeline_mode = #tpu.pipeline_mode<synchronous>, transform_indices = @transform_4, window_bounds = array<i64: 1, 32>}, {pipeline_mode = #tpu.pipeline_mode<synchronous>, transform_indices = @transform_5, window_bounds = array<i64: 32, 32>}, {pipeline_mode = #tpu.pipeline_mode<synchronous>, transform_indices = @transform_6, window_bounds = array<i64: 1, 32>}, {pipeline_mode = #tpu.pipeline_mode<synchronous>, transform_indices = @transform_7, window_bounds = array<i64: 1, 32>}, {pipeline_mode = #tpu.pipeline_mode<synchronous>, transform_indices = @transform_8, window_bounds = array<i64: 1, 1>}, {transform_indices = @transform_9, window_bounds = array<i64: 1, 8>}]} {
    %c0 = arith.constant 0 : index
    %c0_0 = arith.constant 0 : index
    %0 = vector.load %arg1[%c0, %c0_0] : memref<8x16xbf16, #tpu.memory_space<vmem>>, vector<8x16xbf16>
    %c0_1 = arith.constant 0 : index
    %c0_2 = arith.constant 0 : index
    %1 = vector.load %arg3[%c0_1, %c0_2] : memref<16x32xbf16, #tpu.memory_space<vmem>>, vector<16x32xbf16>
    %cst = arith.constant dense<0.000000e+00> : vector<8x32xf32>
    %2 = tpu.matmul %0, %1, %cst {dimension_numbers = #tpu.dot_dimension_numbers<[1], [0], [0], [1], [0, 0, 1, 1], [], []>} : vector<8x16xbf16>, vector<16x32xbf16>, vector<8x32xf32> -> vector<8x32xf32>
    %c0_3 = arith.constant 0 : index
    %c0_4 = arith.constant 0 : index
    %3 = vector.load %arg2[%c0_3, %c0_4] : memref<8x8xbf16, #tpu.memory_space<vmem>>, vector<8x8xbf16>
    %c0_5 = arith.constant 0 : index
    %c0_6 = arith.constant 0 : index
    %4 = vector.load %arg4[%c0_5, %c0_6] : memref<8x32xbf16, #tpu.memory_space<vmem>>, vector<8x32xbf16>
    %cst_7 = arith.constant dense<0.000000e+00> : vector<8x32xf32>
    %5 = tpu.matmul %3, %4, %cst_7 {dimension_numbers = #tpu.dot_dimension_numbers<[1], [0], [0], [1], [0, 0, 1, 1], [], []>} : vector<8x8xbf16>, vector<8x32xbf16>, vector<8x32xf32> -> vector<8x32xf32>
    %6 = arith.addf %2, %5 : vector<8x32xf32>
    %c0_8 = arith.constant 0 : index
    %c0_9 = arith.constant 0 : index
    %7 = vector.load %arg5[%c0_8, %c0_9] : memref<1x32xf32, #tpu.memory_space<vmem>>, vector<1x32xf32>
    %8 = vector.broadcast %7 : vector<1x32xf32> to vector<8x32xf32>
    %9 = arith.addf %6, %8 : vector<8x32xf32>
    %cst_10 = arith.constant 0.000000e+00 : f32
    %10 = vector.broadcast %cst_10 : f32 to vector<8x32xf32>
    %11 = arith.maximumf %9, %10 : vector<8x32xf32>
    %12 = arith.truncf %11 : vector<8x32xf32> to vector<8x32xbf16>
    %c0_11 = arith.constant 0 : index
    %c0_12 = arith.constant 0 : index
    %13 = vector.load %arg6[%c0_11, %c0_12] : memref<32x32xbf16, #tpu.memory_space<vmem>>, vector<32x32xbf16>
    %cst_13 = arith.constant dense<0.000000e+00> : vector<8x32xf32>
    %14 = tpu.matmul %12, %13, %cst_13 {dimension_numbers = #tpu.dot_dimension_numbers<[1], [0], [0], [1], [0, 0, 1, 1], [], []>} : vector<8x32xbf16>, vector<32x32xbf16>, vector<8x32xf32> -> vector<8x32xf32>
    %c0_14 = arith.constant 0 : index
    %c0_15 = arith.constant 0 : index
    %15 = vector.load %arg7[%c0_14, %c0_15] : memref<1x32xf32, #tpu.memory_space<vmem>>, vector<1x32xf32>
    %16 = vector.broadcast %15 : vector<1x32xf32> to vector<8x32xf32>
    %17 = arith.addf %14, %16 : vector<8x32xf32>
    %cst_16 = arith.constant 0.000000e+00 : f32
    %18 = vector.broadcast %cst_16 : f32 to vector<8x32xf32>
    %19 = arith.maximumf %17, %18 : vector<8x32xf32>
    %c0_17 = arith.constant 0 : index
    %c0_18 = arith.constant 0 : index
    %20 = vector.load %arg8[%c0_17, %c0_18] : memref<1x32xbf16, #tpu.memory_space<vmem>>, vector<1x32xbf16>
    %21 = arith.truncf %19 : vector<8x32xf32> to vector<8x32xbf16>
    %cst_19 = arith.constant dense<0.000000e+00> : vector<1x8xf32>
    %22 = tpu.matmul %20, %21, %cst_19 {dimension_numbers = #tpu.dot_dimension_numbers<[1], [1], [0], [0], [0, 0, 1, 0], [], []>} : vector<1x32xbf16>, vector<8x32xbf16>, vector<1x8xf32> -> vector<1x8xf32>
    %c0_20 = arith.constant 0 : index
    %c0_21 = arith.constant 0 : index
    %23 = vector.load %arg9[%c0_20, %c0_21] : memref<1x1xf32, #tpu.memory_space<vmem>>, vector<1x1xf32>
    %24 = vector.broadcast %23 : vector<1x1xf32> to vector<1x8xf32>
    %25 = arith.addf %22, %24 : vector<1x8xf32>
    %c0_22 = arith.constant 0 : index
    %c0_23 = arith.constant 0 : index
    %26 = vector.load %arg10[%c0_22, %c0_23] : memref<1x8xf32, #tpu.memory_space<vmem>>, vector<1x8xf32>
    tpu.vector_store %arg10[%c0_22, %c0_23], %25 {strides = array<i32>} : memref<1x8xf32, #tpu.memory_space<vmem>>, vector<1x8xf32>,
    return
  }
  func.func @transform_0(%arg0: i32) -> (i32, i32) {
    %c0_i32 = arith.constant 0 : i32
    %c0_i32_0 = arith.constant 0 : i32
    return %arg0, %c0_i32 : i32, i32
  }
  func.func @transform_1(%arg0: i32) -> (i32, i32) {
    %c0_i32 = arith.constant 0 : i32
    %c0_i32_0 = arith.constant 0 : i32
    return %arg0, %c0_i32 : i32, i32
  }
  func.func @transform_2(%arg0: i32) -> (i32, i32) {
    %c0_i32 = arith.constant 0 : i32
    %c0_i32_0 = arith.constant 0 : i32
    %c0_i32_1 = arith.constant 0 : i32
    return %c0_i32, %c0_i32_0 : i32, i32
  }
  func.func @transform_3(%arg0: i32) -> (i32, i32) {
    %c0_i32 = arith.constant 0 : i32
    %c0_i32_0 = arith.constant 0 : i32
    %c0_i32_1 = arith.constant 0 : i32
    return %c0_i32, %c0_i32_0 : i32, i32
  }
  func.func @transform_4(%arg0: i32) -> (i32, i32) {
    %c0_i32 = arith.constant 0 : i32
    %c0_i32_0 = arith.constant 0 : i32
    %c0_i32_1 = arith.constant 0 : i32
    return %c0_i32, %c0_i32_0 : i32, i32
  }
  func.func @transform_5(%arg0: i32) -> (i32, i32) {
    %c0_i32 = arith.constant 0 : i32
    %c0_i32_0 = arith.constant 0 : i32
    %c0_i32_1 = arith.constant 0 : i32
    return %c0_i32, %c0_i32_0 : i32, i32
  }
  func.func @transform_6(%arg0: i32) -> (i32, i32) {
    %c0_i32 = arith.constant 0 : i32
    %c0_i32_0 = arith.constant 0 : i32
    %c0_i32_1 = arith.constant 0 : i32
    return %c0_i32, %c0_i32_0 : i32, i32
  }
  func.func @transform_7(%arg0: i32) -> (i32, i32) {
    %c0_i32 = arith.constant 0 : i32
    %c0_i32_0 = arith.constant 0 : i32
    %c0_i32_1 = arith.constant 0 : i32
    return %c0_i32, %c0_i32_0 : i32, i32
  }
  func.func @transform_8(%arg0: i32) -> (i32, i32) {
    %c0_i32 = arith.constant 0 : i32
    %c0_i32_0 = arith.constant 0 : i32
    %c0_i32_1 = arith.constant 0 : i32
    return %c0_i32, %c0_i32_0 : i32, i32
  }
  func.func @transform_9(%arg0: i32) -> (i32, i32) {
    %c0_i32 = arith.constant 0 : i32
    %c0_i32_0 = arith.constant 0 : i32
    return %c0_i32, %arg0 : i32, i32
  }
}

</mosaic_0001>

<llo_original>
// kernel: tpu_custom_call.1
$region0: #{tpu_custom_call.1}
  #allocation0 [shape = 'u32[]', space=smem, size = 0x4, offset = 0x4, fixed_abs, tag = 'smem constant byte address 0x4 - core index']
  #allocation1 [shape = 'u32[72,128]{1,0:T(1,128)}', space=vmem, size = 0x9000, scoped, tag = 'internal scratch']
  #allocation2 [shape = 'f32[1,1]{1,0:T(1,128)S(1)}', space=vmem, size = 0x200, scoped, tag = 'scoped memory for tpu_custom_call.1']
  %s0 = inlined_call_operand.hbm [shape: bf16[8,16], index: 0, kind: input, shape index: {}]
  %s1 = inlined_call_operand.hbm [shape: bf16[8,8], index: 1, kind: input, shape index: {}]
  %s2 = inlined_call_operand.hbm [shape: bf16[16,32], index: 2, kind: input, shape index: {}]
  %s3 = inlined_call_operand.vmem [shape: bf16[8,32], index: 3, kind: input, shape index: {}]
  %s4 = inlined_call_operand.vmem [shape: f32[1,32], index: 4, kind: input, shape index: {}]
  %s5 = inlined_call_operand.hbm [shape: bf16[32,32], index: 5, kind: input, shape index: {}]
  %s6 = inlined_call_operand.vmem [shape: f32[1,32], index: 6, kind: input, shape index: {}]
  %s7 = inlined_call_operand.vmem [shape: bf16[1,32], index: 7, kind: input, shape index: {}]
  %s8 = inlined_call_operand.<no memory space> [shape: f32[1,1], index: 8, kind: input, shape index: {}]
  %s9 = inlined_call_operand.hbm [shape: f32[1,8], index: 9, kind: output, shape index: {}]
  %s10 = sld [smem:[#allocation0]]
  $region62: #{tpu_custom_call.1} parent=0
    _
  %s12 = ssub.s32 1, %s10
  %s13 = scalar_select 0, %s12, %s10
  %v14 = vstv %s8
  %15 = vst [vmem:[#allocation2] sm:$0x1] %v14
  $region1: #{tpu_custom_call.1} parent=0
    #allocation3 [shape = 'u8[2048]{0}', space=vmem, size = 0x800, scoped, tag = 'input window, operand 0, single buffered']
    #allocation4 [shape = 's32[1]{0}', space=sflag, size = 0x4, scoped, tag = 'scoped memory for tpu_custom_call.1']
    #allocation5 [shape = 's32[1]{0}', space=sflag, size = 0x4, scoped, tag = 'scoped memory for tpu_custom_call.1']
    #allocation6 [shape = 'u8[2048]{0}', space=vmem, size = 0x800, scoped, tag = 'input window, operand 1, single buffered']
    #allocation7 [shape = 's32[1]{0}', space=sflag, size = 0x4, scoped, tag = 'scoped memory for tpu_custom_call.1']
    #allocation8 [shape = 'u8[4096]{0}', space=vmem, size = 0x1000, scoped, tag = 'input window, operand 2, single buffered']
    #allocation9 [shape = 'u8[8192]{0}', space=vmem, size = 0x2000, scoped, tag = 'input window, operand 5, single buffered']
    #allocation10 [shape = 's32[1]{0}', space=sflag, size = 0x4, scoped, tag = 'scoped memory for tpu_custom_call.1']
    #allocation11 [shape = 'u8[512]{0}', space=vmem, size = 0x400, scoped, tag = 'output window, operand 0, single buffered']
    %16 = vsyncpa [#allocation4], 0
    %17 = vsyncpa [#allocation7], 0
    %18 = vsyncpa [#allocation10], 0
    %19 = vsyncpa [#allocation5], 0
    // Predicated region
    $region2: #{tpu_custom_call.1} parent=1 // pred_check
      _
    $region3: #{tpu_custom_call.1} parent=1 // pred_check_branch
      %21 = sbr.rel (0) target = $region5
    $region4: #{tpu_custom_call.1} parent=1 // pred_region
      %23 = vsyncadd [#allocation4], 0
      %s25 = sshll.u32 %s0, 4
      %s26 = int_to_ptr.hbm [resolvable:$true] %s25
      %s27 = sshll.u32 [#allocation3], 4
      %s28 = int_to_ptr.vmem [resolvable:$true] %s27
      %30 = dma.hbm_to_vmem [thread:$0]  %s26, 64, %s28, [#allocation4]
    $region5: #{tpu_custom_call.1} parent=1 // pred_fallthru
      _
    // Predicated region
    $region6: #{tpu_custom_call.1} parent=1 // pred_check
      _
    $region7: #{tpu_custom_call.1} parent=1 // pred_check_branch
      %32 = sbr.rel (0) target = $region9
    $region8: #{tpu_custom_call.1} parent=1 // pred_region
      %34 = vsyncadd [#allocation7], 0
      %s36 = sshll.u32 %s1, 4
      %s37 = int_to_ptr.hbm [resolvable:$true] %s36
      %s38 = sshll.u32 [#allocation6], 4
      %s39 = int_to_ptr.vmem [resolvable:$true] %s38
      %41 = dma.hbm_to_vmem [thread:$0]  %s37, 64, %s39, [#allocation7]
    $region9: #{tpu_custom_call.1} parent=1 // pred_fallthru
      _
    // Predicated region
    $region10: #{tpu_custom_call.1} parent=1 // pred_check
      _
    $region11: #{tpu_custom_call.1} parent=1 // pred_check_branch
      %43 = sbr.rel (0) target = $region13
    $region12: #{tpu_custom_call.1} parent=1 // pred_region
      %45 = vsyncadd [#allocation7], 0
      %s46 = sshll.u32 %s2, 4
      %s47 = int_to_ptr.hbm [resolvable:$true] %s46
      %s48 = sshll.u32 [#allocation8], 4
      %s49 = int_to_ptr.vmem [resolvable:$true] %s48
      %54 = dma.hbm_to_vmem [thread:$0]  %s47, 128, %s49, [#allocation7], 64, 64, 4
    $region13: #{tpu_custom_call.1} parent=1 // pred_fallthru
      _
    // Predicated region
    $region14: #{tpu_custom_call.1} parent=1 // pred_check
      _
    $region15: #{tpu_custom_call.1} parent=1 // pred_check_branch
      %56 = sbr.rel (0) target = $region17
    $region16: #{tpu_custom_call.1} parent=1 // pred_region
      _
    $region17: #{tpu_custom_call.1} parent=1 // pred_fallthru
      _
    // Predicated region
    $region18: #{tpu_custom_call.1} parent=1 // pred_check
      _
    $region19: #{tpu_custom_call.1} parent=1 // pred_check_branch
      %58 = sbr.rel (0) target = $region21
    $region20: #{tpu_custom_call.1} parent=1 // pred_region
      _
    $region21: #{tpu_custom_call.1} parent=1 // pred_fallthru
      _
    // Predicated region
    $region22: #{tpu_custom_call.1} parent=1 // pred_check
      _
    $region23: #{tpu_custom_call.1} parent=1 // pred_check_branch
      %60 = sbr.rel (0) target = $region25
    $region24: #{tpu_custom_call.1} parent=1 // pred_region
      %62 = vsyncadd [#allocation10], 0
      %s63 = sshll.u32 %s5, 4
      %s64 = int_to_ptr.hbm [resolvable:$true] %s63
      %s65 = sshll.u32 [#allocation9], 4
      %s66 = int_to_ptr.vmem [resolvable:$true] %s65
      %71 = dma.hbm_to_vmem [thread:$0]  %s64, 256, %s66, [#allocation10], 64, 64, 4
    $region25: #{tpu_custom_call.1} parent=1 // pred_fallthru
      _
    // Predicated region
    $region26: #{tpu_custom_call.1} parent=1 // pred_check
      _
    $region27: #{tpu_custom_call.1} parent=1 // pred_check_branch
      %73 = sbr.rel (0) target = $region29
    $region28: #{tpu_custom_call.1} parent=1 // pred_region
      _
    $region29: #{tpu_custom_call.1} parent=1 // pred_fallthru
      _
    // Predicated region
    $region30: #{tpu_custom_call.1} parent=1 // pred_check
      _
    $region31: #{tpu_custom_call.1} parent=1 // pred_check_branch
      %75 = sbr.rel (0) target = $region33
    $region32: #{tpu_custom_call.1} parent=1 // pred_region
      _
    $region33: #{tpu_custom_call.1} parent=1 // pred_fallthru
      _
    // Predicated region
    $region34: #{tpu_custom_call.1} parent=1 // pred_check
      _
    $region35: #{tpu_custom_call.1} parent=1 // pred_check_branch
      %77 = sbr.rel (0) target = $region37
    $region36: #{tpu_custom_call.1} parent=1 // pred_region
      _
    $region37: #{tpu_custom_call.1} parent=1 // pred_fallthru
      _
    // Predicated region
    $region38: #{tpu_custom_call.1} parent=1 // pred_check
      _
    $region39: #{tpu_custom_call.1} parent=1 // pred_check_branch
      %79 = sbr.rel (0) target = $region41
    $region40: #{tpu_custom_call.1} parent=1 // pred_region
      %81 = dma.done [#allocation4], 64
    $region41: #{tpu_custom_call.1} parent=1 // pred_fallthru
      _
    // Predicated region
    $region42: #{tpu_custom_call.1} parent=1 // pred_check
      _
    $region43: #{tpu_custom_call.1} parent=1 // pred_check_branch
      %83 = sbr.rel (0) target = $region45
    $region44: #{tpu_custom_call.1} parent=1 // pred_region
      %85 = dma.done [#allocation7], 64
    $region45: #{tpu_custom_call.1} parent=1 // pred_fallthru
      _
    // Predicated region
    $region46: #{tpu_custom_call.1} parent=1 // pred_check
      _
    $region47: #{tpu_custom_call.1} parent=1 // pred_check_branch
      %87 = sbr.rel (0) target = $region49
    $region48: #{tpu_custom_call.1} parent=1 // pred_region
      %89 = dma.done [#allocation7], 128
    $region49: #{tpu_custom_call.1} parent=1 // pred_fallthru
      _
    // Predicated region
    $region50: #{tpu_custom_call.1} parent=1 // pred_check
      _
    $region51: #{tpu_custom_call.1} parent=1 // pred_check_branch
      %91 = sbr.rel (0) target = $region53
    $region52: #{tpu_custom_call.1} parent=1 // pred_region
      %93 = dma.done [#allocation10], 256
    $region53: #{tpu_custom_call.1} parent=1 // pred_fallthru
      _
    %v95 = vld [vmem:[#allocation3] sm:$0xf]
    %v96 = vld [vmem:[#allocation8] sm:$0xf]
    %v97 = vld [vmem:[#allocation8 + $0x4] sm:$0xf]
    %v98 = vld [vmem:[#allocation6] sm:$0xf]
    %v99 = vld [vmem:[%s3] sm:$0xf]
    %vm100 = vcmask 64512
    %v102 = vsel %vm100, %v98, 0
    %vm104 = vcmask 1043456
    %v106 = vsel %vm104, %v99, 0
    %108 = vmatpush.bf16.msra.mxu0 0
    %109 = vmatpush.bf16.msra.mxu0 0
    %110 = vmatpush.bf16.msra.mxu0 0
    %111 = vmatpush.bf16.msra.mxu0 0
    %112 = vmatpush.bf16.msra.mxu0 0
    %113 = vmatpush.bf16.msra.mxu0 0
    %114 = vmatpush.bf16.msra.mxu0 0
    %115 = vmatpush.bf16.msra.mxu0 %v106
    %116 = vmatmul.bf16.gmra.mxu0 %v102
    %v117 = vpop.f32.mrf.mxu0
    %v118 = vadd.f32 0.0, %v117
    %v119 = vpop.f32.mrf.mxu0
    %120 = vdwg.mxu0
    %v123 = vunpack.c.l.b16 %v96
    %v124 = vunpack.c.l.b16 %v97
    %v125 = vpack.c.b16 %v124, %v123
    %vm127 = vcmask 130048
    %v129 = vsel %vm127, %v95, 0
    %131 = vmatpush.bf16.msra.mxu0 0
    %132 = vmatpush.bf16.msra.mxu0 0
    %133 = vmatpush.bf16.msra.mxu0 0
    %134 = vmatpush.bf16.msra.mxu0 0
    %135 = vmatpush.bf16.msra.mxu0 0
    %136 = vmatpush.bf16.msra.mxu0 0
    %137 = vmatpush.bf16.msra.mxu0 0
    %138 = vmatpush.bf16.msra.mxu0 %v125
    %139 = vmatmul.bf16.gmra.mxu0 %v129
    %v140 = vpop.f32.mrf.mxu0
    %v141 = vadd.f32 %v118, %v140
    %v142 = vpop.f32.mrf.mxu0
    %143 = vdwg.mxu0
    %v144 = vld [vmem:[%s4] sm:$0x1]
    %v146 = vperm.slane %v144, 0
    %v148 = vadd.f32 %v141, %v146
    %v149 = vmax.f32 %v148, 0.0
    %v150 = vpack.c.bf16 %v149, %v149
    %v151 = vld [vmem:[#allocation9] sm:$0xf]
    %v152 = vld [vmem:[#allocation9 + $0x4] sm:$0xf]
    %v153 = vld [vmem:[#allocation9 + $0x8] sm:$0xf]
    %v154 = vld [vmem:[#allocation9 + $0xc] sm:$0xf]
    %v155 = vld [vmem:[%s6] sm:$0x1]
    %v157 = vperm.slane %v155, 0
    %v163 = vunpack.c.l.b16 %v151
    %v164 = vunpack.c.l.b16 %v152
    %v165 = vunpack.c.l.b16 %v153
    %v166 = vunpack.c.l.b16 %v154
    %v167 = vpack.c.b16 %v164, %v163
    %v168 = vpack.c.b16 %v166, %v165
    %vm171 = vcmask 261120
    %v173 = vsel %vm171, %v150, 0
    %175 = vmatpush.bf16.msra.mxu0 0
    %176 = vmatpush.bf16.msra.mxu0 0
    %177 = vmatpush.bf16.msra.mxu0 0
    %178 = vmatpush.bf16.msra.mxu0 0
    %179 = vmatpush.bf16.msra.mxu0 0
    %180 = vmatpush.bf16.msra.mxu0 0
    %181 = vmatpush.bf16.msra.mxu0 %v168
    %182 = vmatpush.bf16.msra.mxu0 %v167
    %183 = vmatmul.bf16.gmra.mxu0 %v173
    %v184 = vpop.f32.mrf.mxu0
    %v185 = vadd.f32 %v157, %v184
    %v186 = vpop.f32.mrf.mxu0
    %187 = vdwg.mxu0
    %v188 = vmax.f32 %v185, 0.0
    %v189 = vld [vmem:[%s7] sm:$0x1]
    %v190 = vpack.c.bf16 %v188, %v188
    %v191 = vld [vmem:[#allocation2] sm:$0x1]
    %193 = vset.pattern.permute.xlu0 0
    %194 = vperm.xlu0 %193, %v191
    %v195 = vpop.permute.xlu0 %194
    %v197 = vperm.slane %v195, 0
    %v199 = vsel %vm171, %v189, 0
    %v202 = vsel %vm171, %v190, 0
    %204 = vmatpush.bf16.xpose.msra.mxu0 0
    %205 = vmatpush.bf16.xpose.msra.mxu0 0
    %206 = vmatpush.bf16.xpose.msra.mxu0 0
    %207 = vmatpush.bf16.xpose.msra.mxu0 0
    %208 = vmatpush.bf16.xpose.msra.mxu0 0
    %209 = vmatpush.bf16.xpose.msra.mxu0 0
    %210 = vmatpush.bf16.xpose.msra.mxu0 0
    %211 = vmatpush.bf16.xpose.msra.mxu0 %v202
    %212 = vmatmul.bf16.gmra.mxu0 %v199
    %v213 = vpop.f32.mrf.mxu0
    %v214 = vadd.f32 %v197, %v213
    %v215 = vpop.f32.mrf.mxu0
    %216 = vdwg.mxu0
    %vm217 = vcmask 57344
    %218 = vst.msk [vmem:[#allocation11] sm:$0x1] %vm217, %v214
    // Predicated region
    $region54: #{tpu_custom_call.1} parent=1 // pred_check
      _
    $region55: #{tpu_custom_call.1} parent=1 // pred_check_branch
      %220 = sbr.rel (0) target = $region57
    $region56: #{tpu_custom_call.1} parent=1 // pred_region
      %222 = vsyncadd [#allocation5], 0
      %s224 = sshll.u32 [#allocation11], 4
      %s225 = int_to_ptr.vmem [resolvable:$true] %s224
      %s226 = sshll.u32 %s9, 4
      %s227 = int_to_ptr.hbm [resolvable:$true] %s226
      %229 = dma.vmem_to_hbm [thread:$0]  %s225, 16, %s227, [#allocation5]
    $region57: #{tpu_custom_call.1} parent=1 // pred_fallthru
      _
    // Predicated region
    $region58: #{tpu_custom_call.1} parent=1 // pred_check
      _
    $region59: #{tpu_custom_call.1} parent=1 // pred_check_branch
      %231 = sbr.rel (0) target = $region61
    $region60: #{tpu_custom_call.1} parent=1 // pred_region
      %233 = dma.done [#allocation5], 16
    $region61: #{tpu_custom_call.1} parent=1 // pred_fallthru
      _
    %234 = vsyncpa [#allocation4], 1
    %235 = vsyncpa [#allocation7], 1
    %236 = vsyncpa [#allocation10], 1
    %237 = vsyncpa [#allocation5], 1

</llo_original>
